<compile_context>
chip_gen: v7x
topology: tpu7x:2x2x1
jax: 0.10.0
libtpu: 0.0.40
codegen_flags: <defaults>
</compile_context>

<pallas_src>
import jax
import jax.numpy as jnp
from jax.experimental import pallas as pl
from jax.experimental.pallas import tpu as pltpu


def _round_up(x, m):
    return ((x + m - 1) // m) * m


def _choose_tiling(B):
    """Pick (TB, B_pad) for the batch grid.

    * B <= 256: one tile, pad only to the bf16 sublane multiple (16).
    * B  > 256: big tiles (<=1024) to amortize per-step overhead, preferring
      an even/>=2-step grid (v7x megacore), then minimal padding, then fewer
      grid steps.
    """
    if B <= 256:
        TB = _round_up(max(B, 1), 16)
        return TB, TB
    best = None
    for TB in (1024, 512, 256):
        B_pad = _round_up(B, TB)
        n = B_pad // TB
        key = (n < 2, B_pad - B, n)   # prefer >=2 steps, min padding, fewest steps
        if best is None or key < best[0]:
            best = (key, TB, B_pad)
    return best[1], best[2]


def critic_kernel(state_ref, action_ref,
                  w1s_ref, w1a_ref, b1_ref,
                  w2_ref, b2_ref,
                  w3_ref, b3_ref,
                  out_ref):
    # fc1 as a split-concat matmul: state @ W1[:S] + action @ W1[S:].
    # bf16 MXU inputs, f32 accumulation; dot + dot keeps the accumulate on the
    # MXU result path (in-place MRB accumulate on v7x).
    s = state_ref[...].astype(jnp.bfloat16)
    a = action_ref[...].astype(jnp.bfloat16)
    h1 = jnp.dot(s, w1s_ref[...], preferred_element_type=jnp.float32)
    h1 = h1 + jnp.dot(a, w1a_ref[...], preferred_element_type=jnp.float32)
    h1 = jnp.maximum(h1 + b1_ref[...], 0.0)                      # relu(fc1)

    # fc2: the 256x256 matmul — bf16 MXU, f32 accumulation; bias+ReLU on VPU.
    h2 = jnp.dot(h1.astype(jnp.bfloat16), w2_ref[...],
                 preferred_element_type=jnp.float32)
    h2 = jnp.maximum(h2 + b2_ref[...], 0.0)                      # relu(fc2)

    # fc3 (256 -> 1) as an N=1 MXU dot: avoids a 256-lane XLU tree-reduce that
    # would contend with vmatmul on the vector-extended issue slot (v6e/v7x).
    q = jnp.dot(h2.astype(jnp.bfloat16), w3_ref[...],
                preferred_element_type=jnp.float32) + b3_ref[...]
    out_ref[...] = q.astype(out_ref.dtype)


def critic_forward(state, action, params):
    """state: (B, state_dim), action: (B, action_dim) -> (B, 1) float32."""
    w1, b1, w2, b2, w3, b3 = params
    B, state_dim = state.shape
    action_dim = action.shape[1]
    H = w1.shape[1]

    TB, B_pad = _choose_tiling(B)
    if B_pad != B:
        pad = B_pad - B
        state = jnp.pad(state, ((0, pad), (0, 0)))
        action = jnp.pad(action, ((0, pad), (0, 0)))

    # Split W1 so the concat never exists; big-matmul weights in bf16.
    w1_s = w1[:state_dim].astype(jnp.bfloat16)       # (state_dim, H)
    w1_a = w1[state_dim:].astype(jnp.bfloat16)       # (action_dim, H)
    w2_bf = w2.astype(jnp.bfloat16)                  # (H, H)
    w3_bf = w3.reshape(H, 1).astype(jnp.bfloat16)    # (H, 1)  N=1 MXU operand
    b1_2d = b1.reshape(1, H)
    b2_2d = b2.reshape(1, H)
    b3_2d = b3.reshape(1, 1)

    batch_spec = lambda shp: pl.BlockSpec(shp, lambda i: (i, 0))   # streamed
    resident = lambda shp: pl.BlockSpec(shp, lambda i: (0, 0))     # VMEM-resident

    out = pl.pallas_call(
        critic_kernel,
        out_shape=jax.ShapeDtypeStruct((B_pad, 1), jnp.float32),
        grid=(B_pad // TB,),
        in_specs=[
            batch_spec((TB, state_dim)),
            batch_spec((TB, action_dim)),
            resident((state_dim, H)),
            resident((action_dim, H)),
            resident((1, H)),
            resident((H, H)),
            resident((1, H)),
            resident((H, 1)),
            resident((1, 1)),
        ],
        out_specs=batch_spec((TB, 1)),
        compiler_params=pltpu.CompilerParams(
            dimension_semantics=("parallel",)),
    )(state, action, w1_s, w1_a, b1_2d, w2_bf, b2_2d, w3_bf, b3_2d)

    return out[:B]


def init_critic_params(key, state_dim, action_dim, hidden=256):
    """PyTorch-style uniform(-1/sqrt(fan_in), 1/sqrt(fan_in)) init.

    Weights are stored transposed as (fan_in, fan_out) so the kernel computes
    x @ W directly (equivalent to PyTorch's x @ W_torch^T).
    """
    in_dim = state_dim + action_dim
    ks = jax.random.split(key, 6)

    def uniform(k, shape, fan_in):
        bound = 1.0 / jnp.sqrt(jnp.float32(fan_in))
        return jax.random.uniform(k, shape, jnp.float32, -bound, bound)

    w1 = uniform(ks[0], (in_dim, hidden), in_dim)
    b1 = uniform(ks[1], (hidden,), in_dim)
    w2 = uniform(ks[2], (hidden, hidden), hidden)
    b2 = uniform(ks[3], (hidden,), hidden)
    w3 = uniform(ks[4], (hidden, 1), hidden)
    b3 = uniform(ks[5], (1,), hidden)
    return (w1, b1, w2, b2, w3, b3)


def critic_reference(state, action, params):
    """Pure-JAX f32 reference for correctness check."""
    w1, b1, w2, b2, w3, b3 = params
    sa = jnp.concatenate([state, action], axis=1)
    h1 = jax.nn.relu(sa @ w1 + b1)
    h2 = jax.nn.relu(h1 @ w2 + b2)
    return h2 @ w3 + b3


if __name__ == "__main__":
    key = jax.random.PRNGKey(0)
    k_state, k_action, k_params, k_state2, k_action2 = jax.random.split(key, 5)

    batch = 8
    state_dim = 12
    action_dim = 4

    state = jax.random.normal(k_state, (batch, state_dim), jnp.float32)
    action = jax.random.normal(k_action, (batch, action_dim), jnp.float32)
    params = init_critic_params(k_params, state_dim, action_dim, hidden=256)

    q = jax.block_until_ready(critic_forward(state, action, params))
    q_ref = critic_reference(state, action, params)
    assert q.shape == (batch, 1), q.shape
    # fc1/fc2/fc3 use bf16 MXU inputs with f32 accumulation -> loosened tolerance.
    assert jnp.allclose(q, q_ref, atol=3e-2, rtol=3e-2), (q, q_ref)

    # Also exercise the multi-tile (grid > 1) path with a larger batch.
    big_b = 300
    state2 = jax.random.normal(k_state2, (big_b, state_dim), jnp.float32)
    action2 = jax.random.normal(k_action2, (big_b, action_dim), jnp.float32)
    q2 = jax.block_until_ready(critic_forward(state2, action2, params))
    q2_ref = critic_reference(state2, action2, params)
    assert q2.shape == (big_b, 1), q2.shape
    assert jnp.allclose(q2, q2_ref, atol=3e-2, rtol=3e-2)

    print("KERNEL_OK")
</pallas_src>

<mosaic_0001>
module attributes {stable_mosaic.version = 11 : i64} {
  func.func @critic_kernel(%arg0: i32, %arg1: memref<16x12xf32, #tpu.memory_space<vmem>>, %arg2: memref<16x4xf32, #tpu.memory_space<vmem>>, %arg3: memref<12x256xbf16, #tpu.memory_space<vmem>>, %arg4: memref<4x256xbf16, #tpu.memory_space<vmem>>, %arg5: memref<1x256xf32, #tpu.memory_space<vmem>>, %arg6: memref<256x256xbf16, #tpu.memory_space<vmem>>, %arg7: memref<1x256xf32, #tpu.memory_space<vmem>>, %arg8: memref<256x1xbf16, #tpu.memory_space<vmem>>, %arg9: memref<1x1xf32, #tpu.memory_space<vmem>>, %arg10: memref<16x1xf32, #tpu.memory_space<vmem>>) attributes {dimension_semantics = [#tpu.dimension_semantics<parallel>], iteration_bounds = array<i64: 1>, scalar_prefetch = 0 : i64, scratch_operands = 0 : i64, tpu.core_type = #tpu.core_type<tc>, window_params = [{transform_indices = @transform_0, window_bounds = array<i64: 16, 12>}, {transform_indices = @transform_1, window_bounds = array<i64: 16, 4>}, {pipeline_mode = #tpu.pipeline_mode<synchronous>, transform_indices = @transform_2, window_bounds = array<i64: 12, 256>}, {pipeline_mode = #tpu.pipeline_mode<synchronous>, transform_indices = @transform_3, window_bounds = array<i64: 4, 256>}, {pipeline_mode = #tpu.pipeline_mode<synchronous>, transform_indices = @transform_4, window_bounds = array<i64: 1, 256>}, {pipeline_mode = #tpu.pipeline_mode<synchronous>, transform_indices = @transform_5, window_bounds = array<i64: 256, 256>}, {pipeline_mode = #tpu.pipeline_mode<synchronous>, transform_indices = @transform_6, window_bounds = array<i64: 1, 256>}, {pipeline_mode = #tpu.pipeline_mode<synchronous>, transform_indices = @transform_7, window_bounds = array<i64: 256, 1>}, {pipeline_mode = #tpu.pipeline_mode<synchronous>, transform_indices = @transform_8, window_bounds = array<i64: 1, 1>}, {transform_indices = @transform_9, window_bounds = array<i64: 16, 1>}]} {
    %c0 = arith.constant 0 : index
    %c0_0 = arith.constant 0 : index
    %0 = vector.load %arg1[%c0, %c0_0] : memref<16x12xf32, #tpu.memory_space<vmem>>, vector<16x12xf32>
    %1 = arith.truncf %0 : vector<16x12xf32> to vector<16x12xbf16>
    %c0_1 = arith.constant 0 : index
    %c0_2 = arith.constant 0 : index
    %2 = vector.load %arg2[%c0_1, %c0_2] : memref<16x4xf32, #tpu.memory_space<vmem>>, vector<16x4xf32>
    %3 = arith.truncf %2 : vector<16x4xf32> to vector<16x4xbf16>
    %c0_3 = arith.constant 0 : index
    %c0_4 = arith.constant 0 : index
    %4 = vector.load %arg3[%c0_3, %c0_4] : memref<12x256xbf16, #tpu.memory_space<vmem>>, vector<12x256xbf16>
    %cst = arith.constant dense<0.000000e+00> : vector<16x256xf32>
    %5 = tpu.matmul %1, %4, %cst {dimension_numbers = #tpu.dot_dimension_numbers<[1], [0], [0], [1], [0, 0, 1, 1], [], []>} : vector<16x12xbf16>, vector<12x256xbf16>, vector<16x256xf32> -> vector<16x256xf32>
    %c0_5 = arith.constant 0 : index
    %c0_6 = arith.constant 0 : index
    %6 = vector.load %arg4[%c0_5, %c0_6] : memref<4x256xbf16, #tpu.memory_space<vmem>>, vector<4x256xbf16>
    %cst_7 = arith.constant dense<0.000000e+00> : vector<16x256xf32>
    %7 = tpu.matmul %3, %6, %cst_7 {dimension_numbers = #tpu.dot_dimension_numbers<[1], [0], [0], [1], [0, 0, 1, 1], [], []>} : vector<16x4xbf16>, vector<4x256xbf16>, vector<16x256xf32> -> vector<16x256xf32>
    %8 = arith.addf %5, %7 : vector<16x256xf32>
    %c0_8 = arith.constant 0 : index
    %c0_9 = arith.constant 0 : index
    %9 = vector.load %arg5[%c0_8, %c0_9] : memref<1x256xf32, #tpu.memory_space<vmem>>, vector<1x256xf32>
    %10 = vector.broadcast %9 : vector<1x256xf32> to vector<16x256xf32>
    %11 = arith.addf %8, %10 : vector<16x256xf32>
    %cst_10 = arith.constant 0.000000e+00 : f32
    %12 = vector.broadcast %cst_10 : f32 to vector<16x256xf32>
    %13 = arith.maximumf %11, %12 : vector<16x256xf32>
    %14 = arith.truncf %13 : vector<16x256xf32> to vector<16x256xbf16>
    %c0_11 = arith.constant 0 : index
    %c0_12 = arith.constant 0 : index
    %15 = vector.load %arg6[%c0_11, %c0_12] : memref<256x256xbf16, #tpu.memory_space<vmem>>, vector<256x256xbf16>
    %cst_13 = arith.constant dense<0.000000e+00> : vector<16x256xf32>
    %16 = tpu.matmul %14, %15, %cst_13 {dimension_numbers = #tpu.dot_dimension_numbers<[1], [0], [0], [1], [0, 0, 1, 1], [], []>} : vector<16x256xbf16>, vector<256x256xbf16>, vector<16x256xf32> -> vector<16x256xf32>
    %c0_14 = arith.constant 0 : index
    %c0_15 = arith.constant 0 : index
    %17 = vector.load %arg7[%c0_14, %c0_15] : memref<1x256xf32, #tpu.memory_space<vmem>>, vector<1x256xf32>
    %18 = vector.broadcast %17 : vector<1x256xf32> to vector<16x256xf32>
    %19 = arith.addf %16, %18 : vector<16x256xf32>
    %cst_16 = arith.constant 0.000000e+00 : f32
    %20 = vector.broadcast %cst_16 : f32 to vector<16x256xf32>
    %21 = arith.maximumf %19, %20 : vector<16x256xf32>
    %22 = arith.truncf %21 : vector<16x256xf32> to vector<16x256xbf16>
    %c0_17 = arith.constant 0 : index
    %c0_18 = arith.constant 0 : index
    %23 = vector.load %arg8[%c0_17, %c0_18] : memref<256x1xbf16, #tpu.memory_space<vmem>>, vector<256x1xbf16>
    %cst_19 = arith.constant dense<0.000000e+00> : vector<16x1xf32>
    %24 = tpu.matmul %22, %23, %cst_19 {dimension_numbers = #tpu.dot_dimension_numbers<[1], [0], [0], [1], [0, 0, 1, 1], [], []>} : vector<16x256xbf16>, vector<256x1xbf16>, vector<16x1xf32> -> vector<16x1xf32>
    %c0_20 = arith.constant 0 : index
    %c0_21 = arith.constant 0 : index
    %25 = vector.load %arg9[%c0_20, %c0_21] : memref<1x1xf32, #tpu.memory_space<vmem>>, vector<1x1xf32>
    %26 = vector.broadcast %25 : vector<1x1xf32> to vector<16x1xf32>
    %27 = arith.addf %24, %26 : vector<16x1xf32>
    %c0_22 = arith.constant 0 : index
    %c0_23 = arith.constant 0 : index
    %28 = vector.load %arg10[%c0_22, %c0_23] : memref<16x1xf32, #tpu.memory_space<vmem>>, vector<16x1xf32>
    tpu.vector_store %arg10[%c0_22, %c0_23], %27 {strides = array<i32>} : memref<16x1xf32, #tpu.memory_space<vmem>>, vector<16x1xf32>,
    return
  }
  func.func @transform_0(%arg0: i32) -> (i32, i32) {
    %c0_i32 = arith.constant 0 : i32
    %c0_i32_0 = arith.constant 0 : i32
    return %arg0, %c0_i32 : i32, i32
  }
  func.func @transform_1(%arg0: i32) -> (i32, i32) {
    %c0_i32 = arith.constant 0 : i32
    %c0_i32_0 = arith.constant 0 : i32
    return %arg0, %c0_i32 : i32, i32
  }
  func.func @transform_2(%arg0: i32) -> (i32, i32) {
    %c0_i32 = arith.constant 0 : i32
    %c0_i32_0 = arith.constant 0 : i32
    %c0_i32_1 = arith.constant 0 : i32
    return %c0_i32, %c0_i32_0 : i32, i32
  }
  func.func @transform_3(%arg0: i32) -> (i32, i32) {
    %c0_i32 = arith.constant 0 : i32
    %c0_i32_0 = arith.constant 0 : i32
    %c0_i32_1 = arith.constant 0 : i32
    return %c0_i32, %c0_i32_0 : i32, i32
  }
  func.func @transform_4(%arg0: i32) -> (i32, i32) {
    %c0_i32 = arith.constant 0 : i32
    %c0_i32_0 = arith.constant 0 : i32
    %c0_i32_1 = arith.constant 0 : i32
    return %c0_i32, %c0_i32_0 : i32, i32
  }
  func.func @transform_5(%arg0: i32) -> (i32, i32) {
    %c0_i32 = arith.constant 0 : i32
    %c0_i32_0 = arith.constant 0 : i32
    %c0_i32_1 = arith.constant 0 : i32
    return %c0_i32, %c0_i32_0 : i32, i32
  }
  func.func @transform_6(%arg0: i32) -> (i32, i32) {
    %c0_i32 = arith.constant 0 : i32
    %c0_i32_0 = arith.constant 0 : i32
    %c0_i32_1 = arith.constant 0 : i32
    return %c0_i32, %c0_i32_0 : i32, i32
  }
  func.func @transform_7(%arg0: i32) -> (i32, i32) {
    %c0_i32 = arith.constant 0 : i32
    %c0_i32_0 = arith.constant 0 : i32
    %c0_i32_1 = arith.constant 0 : i32
    return %c0_i32, %c0_i32_0 : i32, i32
  }
  func.func @transform_8(%arg0: i32) -> (i32, i32) {
    %c0_i32 = arith.constant 0 : i32
    %c0_i32_0 = arith.constant 0 : i32
    %c0_i32_1 = arith.constant 0 : i32
    return %c0_i32, %c0_i32_0 : i32, i32
  }
  func.func @transform_9(%arg0: i32) -> (i32, i32) {
    %c0_i32 = arith.constant 0 : i32
    %c0_i32_0 = arith.constant 0 : i32
    return %arg0, %c0_i32 : i32, i32
  }
}

</mosaic_0001>

<llo_original>
// kernel: tpu_custom_call.1
$region0: #{tpu_custom_call.1}
  #allocation0 [shape = 'u32[]', space=smem, size = 0x4, offset = 0x4, fixed_abs, tag = 'smem constant byte address 0x4 - core index']
  #allocation1 [shape = 'u32[144,128]{1,0:T(1,128)}', space=vmem, size = 0x12000, scoped, tag = 'internal scratch']
  #allocation2 [shape = 'f32[1,1]{1,0:T(1,128)S(1)}', space=vmem, size = 0x200, scoped, tag = 'scoped memory for tpu_custom_call.1']
  %s0 = inlined_call_operand.vmem [shape: f32[16,12], index: 0, kind: input, shape index: {}]
  %s1 = inlined_call_operand.vmem [shape: f32[16,4], index: 1, kind: input, shape index: {}]
  %s2 = inlined_call_operand.vmem [shape: bf16[12,256], index: 2, kind: input, shape index: {}]
  %s3 = inlined_call_operand.vmem [shape: bf16[4,256], index: 3, kind: input, shape index: {}]
  %s4 = inlined_call_operand.vmem [shape: f32[1,256], index: 4, kind: input, shape index: {}]
  %s5 = inlined_call_operand.hbm [shape: bf16[256,256], index: 5, kind: input, shape index: {}]
  %s6 = inlined_call_operand.vmem [shape: f32[1,256], index: 6, kind: input, shape index: {}]
  %s7 = inlined_call_operand.vmem [shape: bf16[256,1], index: 7, kind: input, shape index: {}]
  %s8 = inlined_call_operand.<no memory space> [shape: f32[1,1], index: 8, kind: input, shape index: {}]
  %s9 = inlined_call_operand.vmem [shape: f32[16,1], index: 9, kind: output, shape index: {}]
  %s10 = sld [smem:[#allocation0]]
  $region50: #{tpu_custom_call.1} parent=0
    _
  %s12 = ssub.s32 1, %s10
  %s13 = scalar_select 0, %s12, %s10
  %v14 = vstv %s8
  %15 = vst [vmem:[#allocation2] sm:$0x1] %v14
  $region1: #{tpu_custom_call.1} parent=0
    #allocation3 [shape = 'u8[131072]{0}', space=vmem, size = 0x20000, scoped, tag = 'input window, operand 5, single buffered']
    #allocation4 [shape = 's32[1]{0}', space=sflag, size = 0x4, scoped, tag = 'scoped memory for tpu_custom_call.1']
    %16 = vsyncpa [#allocation4], 0
    // Predicated region
    $region2: #{tpu_custom_call.1} parent=1 // pred_check
      _
    $region3: #{tpu_custom_call.1} parent=1 // pred_check_branch
      %18 = sbr.rel (0) target = $region5
    $region4: #{tpu_custom_call.1} parent=1 // pred_region
      _
    $region5: #{tpu_custom_call.1} parent=1 // pred_fallthru
      _
    // Predicated region
    $region6: #{tpu_custom_call.1} parent=1 // pred_check
      _
    $region7: #{tpu_custom_call.1} parent=1 // pred_check_branch
      %20 = sbr.rel (0) target = $region9
    $region8: #{tpu_custom_call.1} parent=1 // pred_region
      _
    $region9: #{tpu_custom_call.1} parent=1 // pred_fallthru
      _
    // Predicated region
    $region10: #{tpu_custom_call.1} parent=1 // pred_check
      _
    $region11: #{tpu_custom_call.1} parent=1 // pred_check_branch
      %22 = sbr.rel (0) target = $region13
    $region12: #{tpu_custom_call.1} parent=1 // pred_region
      _
    $region13: #{tpu_custom_call.1} parent=1 // pred_fallthru
      _
    // Predicated region
    $region14: #{tpu_custom_call.1} parent=1 // pred_check
      _
    $region15: #{tpu_custom_call.1} parent=1 // pred_check_branch
      %24 = sbr.rel (0) target = $region17
    $region16: #{tpu_custom_call.1} parent=1 // pred_region
      _
    $region17: #{tpu_custom_call.1} parent=1 // pred_fallthru
      _
    // Predicated region
    $region18: #{tpu_custom_call.1} parent=1 // pred_check
      _
    $region19: #{tpu_custom_call.1} parent=1 // pred_check_branch
      %26 = sbr.rel (0) target = $region21
    $region20: #{tpu_custom_call.1} parent=1 // pred_region
      _
    $region21: #{tpu_custom_call.1} parent=1 // pred_fallthru
      _
    // Predicated region
    $region22: #{tpu_custom_call.1} parent=1 // pred_check
      _
    $region23: #{tpu_custom_call.1} parent=1 // pred_check_branch
      %28 = sbr.rel (0) target = $region25
    $region24: #{tpu_custom_call.1} parent=1 // pred_region
      %s30 = ssub.s32 4096, 4096
      %31 = vsyncadd [#allocation4], %s30
      %s32 = sshll.u32 [#allocation3], 4
      %s33 = int_to_ptr.vmem [resolvable:$true] %s32
      %38 = dma.hbm_to_vmem [thread:$0]  %s5, 4096, %s33, [#allocation4], 128, 128, 8
    $region25: #{tpu_custom_call.1} parent=1 // pred_fallthru
      _
    // Predicated region
    $region26: #{tpu_custom_call.1} parent=1 // pred_check
      _
    $region27: #{tpu_custom_call.1} parent=1 // pred_check_branch
      %40 = sbr.rel (0) target = $region29
    $region28: #{tpu_custom_call.1} parent=1 // pred_region
      _
    $region29: #{tpu_custom_call.1} parent=1 // pred_fallthru
      _
    // Predicated region
    $region30: #{tpu_custom_call.1} parent=1 // pred_check
      _
    $region31: #{tpu_custom_call.1} parent=1 // pred_check_branch
      %42 = sbr.rel (0) target = $region33
    $region32: #{tpu_custom_call.1} parent=1 // pred_region
      _
    $region33: #{tpu_custom_call.1} parent=1 // pred_fallthru
      _
    // Predicated region
    $region34: #{tpu_custom_call.1} parent=1 // pred_check
      _
    $region35: #{tpu_custom_call.1} parent=1 // pred_check_branch
      %44 = sbr.rel (0) target = $region37
    $region36: #{tpu_custom_call.1} parent=1 // pred_region
      _
    $region37: #{tpu_custom_call.1} parent=1 // pred_fallthru
      _
    // Predicated region
    $region38: #{tpu_custom_call.1} parent=1 // pred_check
      _
    $region39: #{tpu_custom_call.1} parent=1 // pred_check_branch
      %46 = sbr.rel (0) target = $region41
    $region40: #{tpu_custom_call.1} parent=1 // pred_region
      %47 = dma.done [#allocation4], 4096
    $region41: #{tpu_custom_call.1} parent=1 // pred_fallthru
      _
    %v49 = vld [vmem:[%s0] sm:$0xff]
    %v50 = vld [vmem:[%s0 + $0x8] sm:$0xff]
    %v51 = vpack.c.bf16 %v50, %v49
    %v52 = vld [vmem:[%s1] sm:$0xff]
    %v53 = vld [vmem:[%s1 + $0x8] sm:$0xff]
    %v54 = vpack.c.bf16 %v53, %v52
    %v55 = vld [vmem:[%s2] sm:$0xff]
    %v56 = vld [vmem:[%s2 + $0x8] sm:$0x33]
    %v57 = vld [vmem:[%s3] sm:$0xf]
    %v60 = vunpack.c.l.s4 1983009808
    %v61 = vunpack.c.0.s8 %v60
    %v62 = vlaneseq
    %v63 = vshrl.u32 %v62, 7
    %v64 = vsub.s32 %v61, %v63
    %v65 = vrot.slane %v57, %v64
    %v66 = vcombine.high %v65, %v65
    %vm67 = vcmask 31744
    %v69 = vsel %vm67, %v54, 0
    %vm71 = vcmask 1041408
    %v73 = vsel %vm71, %v65, 0
    %v76 = vsel %vm71, %v66, 0
    %78 = vmatprep.subr.bf16.mxu0 %v76
    %79 = vmatpush1.bf16.msra.mxu0 %v73
    %80 = vmatprep.subr.bf16.mxu0 0
    %81 = vmatpush1.bf16.msra.mxu0 0
    %82 = vmatprep.subr.bf16.mxu0 0
    %83 = vmatpush1.bf16.msra.mxu0 0
    %84 = vmatprep.subr.bf16.mxu0 0
    %85 = vmatpush1.bf16.msra.mxu0 0
    %86 = vmatprep.subr.bf16.mxu0 0
    %87 = vmatpush1.bf16.msra.mxu0 0
    %88 = vmatprep.subr.bf16.mxu0 0
    %89 = vmatpush1.bf16.msra.mxu0 0
    %90 = vmatprep.subr.bf16.mxu0 0
    %91 = vmatpush1.bf16.msra.mxu0 0
    %92 = vmatprep.subr.bf16.mxu0 0
    %93 = vmatpush1.bf16.msra.mxu0 0
    %94 = vmatprep.subr.bf16.mxu0 0
    %95 = vmatpush1.bf16.msra.mxu0 0
    %96 = vmatprep.subr.bf16.mxu0 0
    %97 = vmatpush1.bf16.msra.mxu0 0
    %98 = vmatprep.subr.bf16.mxu0 0
    %99 = vmatpush1.bf16.msra.mxu0 0
    %100 = vmatprep.subr.bf16.mxu0 0
    %101 = vmatpush1.bf16.msra.mxu0 0
    %102 = vmatprep.subr.bf16.mxu0 0
    %103 = vmatpush1.bf16.msra.mxu0 0
    %104 = vmatprep.subr.bf16.mxu0 0
    %105 = vmatpush1.bf16.msra.mxu0 0
    %106 = vmatprep.subr.bf16.mxu0 0
    %107 = vmatpush1.bf16.msra.mxu0 0
    %108 = vmatprep.subr.bf16.mxu0 0
    %109 = vmatpush1.bf16.msra.mxu0 0
    %110 = vmatprep.mubr.bf16.mxu0 0
    %111 = vmatmul.mubr.bf16.gmra.mrb[0].mxu0 %v69
    %v112 = vpop.f32.mrb[0].mxu0
    %v113 = vadd.f32 0.0, %v112
    %v114 = vpop.f32.mrb[0].mxu0
    %v115 = vadd.f32 0.0, %v114
    %v116 = vpop.f32.mrb[0].mxu0
    %v117 = vadd.f32 0.0, %v116
    %v118 = vpop.f32.mrb[0].mxu0
    %v119 = vadd.f32 0.0, %v118
    %120 = vdwg.mxu0
    %v123 = vunpack.c.l.b16 %v55
    %v124 = vunpack.c.h.b16 %v55
    %v125 = vunpack.c.l.b16 %v56
    %v126 = vunpack.c.h.b16 %v56
    %v127 = vpack.c.b16 %v125, %v123
    %v128 = vpack.c.b16 %v126, %v124
    %vm129 = vcmask 97280
    %v131 = vsel %vm129, %v51, 0
    %vm133 = vcmask 1045504
    %v135 = vsel %vm133, %v127, 0
    %v138 = vsel %vm133, %v128, 0
    %140 = vmatprep.subr.bf16.mxu0 %v138
    %141 = vmatpush1.bf16.msra.mxu0 %v135
    %142 = vmatprep.subr.bf16.mxu0 0
    %143 = vmatpush1.bf16.msra.mxu0 0
    %144 = vmatprep.subr.bf16.mxu0 0
    %145 = vmatpush1.bf16.msra.mxu0 0
    %146 = vmatprep.subr.bf16.mxu0 0
    %147 = vmatpush1.bf16.msra.mxu0 0
    %148 = vmatprep.subr.bf16.mxu0 0
    %149 = vmatpush1.bf16.msra.mxu0 0
    %150 = vmatprep.subr.bf16.mxu0 0
    %151 = vmatpush1.bf16.msra.mxu0 0
    %152 = vmatprep.subr.bf16.mxu0 0
    %153 = vmatpush1.bf16.msra.mxu0 0
    %154 = vmatprep.subr.bf16.mxu0 0
    %155 = vmatpush1.bf16.msra.mxu0 0
    %156 = vmatprep.subr.bf16.mxu0 0
    %157 = vmatpush1.bf16.msra.mxu0 0
    %158 = vmatprep.subr.bf16.mxu0 0
    %159 = vmatpush1.bf16.msra.mxu0 0
    %160 = vmatprep.subr.bf16.mxu0 0
    %161 = vmatpush1.bf16.msra.mxu0 0
    %162 = vmatprep.subr.bf16.mxu0 0
    %163 = vmatpush1.bf16.msra.mxu0 0
    %164 = vmatprep.subr.bf16.mxu0 0
    %165 = vmatpush1.bf16.msra.mxu0 0
    %166 = vmatprep.subr.bf16.mxu0 0
    %167 = vmatpush1.bf16.msra.mxu0 0
    %168 = vmatprep.subr.bf16.mxu0 0
    %169 = vmatpush1.bf16.msra.mxu0 0
    %170 = vmatprep.subr.bf16.mxu0 0
    %171 = vmatpush1.bf16.msra.mxu0 0
    %172 = vmatprep.mubr.bf16.mxu0 0
    %173 = vmatmul.mubr.bf16.gmra.mrb[0].mxu0 %v131
    %v174 = vpop.f32.mrb[0].mxu0
    %v175 = vadd.f32 %v113, %v174
    %v176 = vpop.f32.mrb[0].mxu0
    %v177 = vadd.f32 %v115, %v176
    %v178 = vpop.f32.mrb[0].mxu0
    %v179 = vadd.f32 %v117, %v178
    %v180 = vpop.f32.mrb[0].mxu0
    %v181 = vadd.f32 %v119, %v180
    %182 = vdwg.mxu0
    %v183 = vld [vmem:[%s4] sm:$0x3]
    %v185 = vlaneseq
    %v186 = vshrl.u32 %v185, 7
    %v187 = vsub.s32 0, %v186
    %v188 = vrot.slane %v183, %v187
    %v189 = vlaneseq
    %v190 = vshrl.u32 %v189, 7
    %v191 = vsub.s32 1, %v190
    %v192 = vrot.slane %v183, %v191
    %v195 = vadd.f32 %v175, %v188
    %v196 = vadd.f32 %v177, %v192
    %v197 = vadd.f32 %v179, %v188
    %v198 = vadd.f32 %v181, %v192
    %v199 = vmax.f32 %v195, 0.0
    %v200 = vmax.f32 %v196, 0.0
    %v201 = vmax.f32 %v197, 0.0
    %v202 = vmax.f32 %v198, 0.0
    %v203 = vpack.c.bf16 %v201, %v199
    %v204 = vpack.c.bf16 %v202, %v200
    %v205 = vld [vmem:[#allocation3] sm:$0xff]
    %v206 = vld [vmem:[#allocation3 + $0x8] sm:$0xff]
    %v207 = vld [vmem:[#allocation3 + $0x10] sm:$0xff]
    %v208 = vld [vmem:[#allocation3 + $0x18] sm:$0xff]
    %v209 = vld [vmem:[#allocation3 + $0x20] sm:$0xff]
    %v210 = vld [vmem:[#allocation3 + $0x28] sm:$0xff]
    %v211 = vld [vmem:[#allocation3 + $0x30] sm:$0xff]
    %v212 = vld [vmem:[#allocation3 + $0x38] sm:$0xff]
    %v213 = vld [vmem:[#allocation3 + $0x40] sm:$0xff]
    %v214 = vld [vmem:[#allocation3 + $0x48] sm:$0xff]
    %v215 = vld [vmem:[#allocation3 + $0x50] sm:$0xff]
    %v216 = vld [vmem:[#allocation3 + $0x58] sm:$0xff]
    %v217 = vld [vmem:[#allocation3 + $0x60] sm:$0xff]
    %v218 = vld [vmem:[#allocation3 + $0x68] sm:$0xff]
    %v219 = vld [vmem:[#allocation3 + $0x70] sm:$0xff]
    %v220 = vld [vmem:[#allocation3 + $0x78] sm:$0xff]
    %v221 = vld [vmem:[#allocation3 + $0x80] sm:$0xff]
    %v222 = vld [vmem:[#allocation3 + $0x88] sm:$0xff]
    %v223 = vld [vmem:[#allocation3 + $0x90] sm:$0xff]
    %v224 = vld [vmem:[#allocation3 + $0x98] sm:$0xff]
    %v225 = vld [vmem:[#allocation3 + $0xa0] sm:$0xff]
    %v226 = vld [vmem:[#allocation3 + $0xa8] sm:$0xff]
    %v227 = vld [vmem:[#allocation3 + $0xb0] sm:$0xff]
    %v228 = vld [vmem:[#allocation3 + $0xb8] sm:$0xff]
    %v229 = vld [vmem:[#allocation3 + $0xc0] sm:$0xff]
    %v230 = vld [vmem:[#allocation3 + $0xc8] sm:$0xff]
    %v231 = vld [vmem:[#allocation3 + $0xd0] sm:$0xff]
    %v232 = vld [vmem:[#allocation3 + $0xd8] sm:$0xff]
    %v233 = vld [vmem:[#allocation3 + $0xe0] sm:$0xff]
    %v234 = vld [vmem:[#allocation3 + $0xe8] sm:$0xff]
    %v235 = vld [vmem:[#allocation3 + $0xf0] sm:$0xff]
    %v236 = vld [vmem:[#allocation3 + $0xf8] sm:$0xff]
    %v237 = vld [vmem:[%s6] sm:$0x3]
    %v239 = vlaneseq
    %v240 = vshrl.u32 %v239, 7
    %v241 = vsub.s32 0, %v240
    %v242 = vrot.slane %v237, %v241
    %v243 = vlaneseq
    %v244 = vshrl.u32 %v243, 7
    %v245 = vsub.s32 1, %v244
    %v246 = vrot.slane %v237, %v245
    %v281 = vunpack.c.l.b16 %v205
    %v282 = vunpack.c.h.b16 %v205
    %v283 = vunpack.c.l.b16 %v206
    %v284 = vunpack.c.h.b16 %v206
    %v285 = vunpack.c.l.b16 %v207
    %v286 = vunpack.c.h.b16 %v207
    %v287 = vunpack.c.l.b16 %v208
    %v288 = vunpack.c.h.b16 %v208
    %v289 = vunpack.c.l.b16 %v209
    %v290 = vunpack.c.h.b16 %v209
    %v291 = vunpack.c.l.b16 %v210
    %v292 = vunpack.c.h.b16 %v210
    %v293 = vunpack.c.l.b16 %v211
    %v294 = vunpack.c.h.b16 %v211
    %v295 = vunpack.c.l.b16 %v212
    %v296 = vunpack.c.h.b16 %v212
    %v297 = vunpack.c.l.b16 %v213
    %v298 = vunpack.c.h.b16 %v213
    %v299 = vunpack.c.l.b16 %v214
    %v300 = vunpack.c.h.b16 %v214
    %v301 = vunpack.c.l.b16 %v215
    %v302 = vunpack.c.h.b16 %v215
    %v303 = vunpack.c.l.b16 %v216
    %v304 = vunpack.c.h.b16 %v216
    %v305 = vunpack.c.l.b16 %v217
    %v306 = vunpack.c.h.b16 %v217
    %v307 = vunpack.c.l.b16 %v218
    %v308 = vunpack.c.h.b16 %v218
    %v309 = vunpack.c.l.b16 %v219
    %v310 = vunpack.c.h.b16 %v219
    %v311 = vunpack.c.l.b16 %v220
    %v312 = vunpack.c.h.b16 %v220
    %v313 = vunpack.c.l.b16 %v221
    %v314 = vunpack.c.h.b16 %v221
    %v315 = vunpack.c.l.b16 %v222
    %v316 = vunpack.c.h.b16 %v222
    %v317 = vunpack.c.l.b16 %v223
    %v318 = vunpack.c.h.b16 %v223
    %v319 = vunpack.c.l.b16 %v224
    %v320 = vunpack.c.h.b16 %v224
    %v321 = vunpack.c.l.b16 %v225
    %v322 = vunpack.c.h.b16 %v225
    %v323 = vunpack.c.l.b16 %v226
    %v324 = vunpack.c.h.b16 %v226
    %v325 = vunpack.c.l.b16 %v227
    %v326 = vunpack.c.h.b16 %v227
    %v327 = vunpack.c.l.b16 %v228
    %v328 = vunpack.c.h.b16 %v228
    %v329 = vunpack.c.l.b16 %v229
    %v330 = vunpack.c.h.b16 %v229
    %v331 = vunpack.c.l.b16 %v230
    %v332 = vunpack.c.h.b16 %v230
    %v333 = vunpack.c.l.b16 %v231
    %v334 = vunpack.c.h.b16 %v231
    %v335 = vunpack.c.l.b16 %v232
    %v336 = vunpack.c.h.b16 %v232
    %v337 = vunpack.c.l.b16 %v233
    %v338 = vunpack.c.h.b16 %v233
    %v339 = vunpack.c.l.b16 %v234
    %v340 = vunpack.c.h.b16 %v234
    %v341 = vunpack.c.l.b16 %v235
    %v342 = vunpack.c.h.b16 %v235
    %v343 = vunpack.c.l.b16 %v236
    %v344 = vunpack.c.h.b16 %v236
    %v345 = vpack.c.b16 %v283, %v281
    %v346 = vpack.c.b16 %v284, %v282
    %v347 = vpack.c.b16 %v287, %v285
    %v348 = vpack.c.b16 %v288, %v286
    %v349 = vpack.c.b16 %v291, %v289
    %v350 = vpack.c.b16 %v292, %v290
    %v351 = vpack.c.b16 %v295, %v293
    %v352 = vpack.c.b16 %v296, %v294
    %v353 = vpack.c.b16 %v299, %v297
    %v354 = vpack.c.b16 %v300, %v298
    %v355 = vpack.c.b16 %v303, %v301
    %v356 = vpack.c.b16 %v304, %v302
    %v357 = vpack.c.b16 %v307, %v305
    %v358 = vpack.c.b16 %v308, %v306
    %v359 = vpack.c.b16 %v311, %v309
    %v360 = vpack.c.b16 %v312, %v310
    %v361 = vpack.c.b16 %v315, %v313
    %v362 = vpack.c.b16 %v316, %v314
    %v363 = vpack.c.b16 %v319, %v317
    %v364 = vpack.c.b16 %v320, %v318
    %v365 = vpack.c.b16 %v323, %v321
    %v366 = vpack.c.b16 %v324, %v322
    %v367 = vpack.c.b16 %v327, %v325
    %v368 = vpack.c.b16 %v328, %v326
    %v369 = vpack.c.b16 %v331, %v329
    %v370 = vpack.c.b16 %v332, %v330
    %v371 = vpack.c.b16 %v335, %v333
    %v372 = vpack.c.b16 %v336, %v334
    %v373 = vpack.c.b16 %v339, %v337
    %v374 = vpack.c.b16 %v340, %v338
    %v375 = vpack.c.b16 %v343, %v341
    %v376 = vpack.c.b16 %v344, %v342
    %409 = vmatprep.subr.bf16.mxu0 %v346
    %410 = vmatpush1.bf16.msra.mxu0 %v345
    %411 = vmatprep.subr.bf16.mxu0 %v348
    %412 = vmatpush1.bf16.msra.mxu0 %v347
    %413 = vmatprep.subr.bf16.mxu0 %v350
    %414 = vmatpush1.bf16.msra.mxu0 %v349
    %415 = vmatprep.subr.bf16.mxu0 %v352
    %416 = vmatpush1.bf16.msra.mxu0 %v351
    %417 = vmatprep.subr.bf16.mxu0 %v354
    %418 = vmatpush1.bf16.msra.mxu0 %v353
    %419 = vmatprep.subr.bf16.mxu0 %v356
    %420 = vmatpush1.bf16.msra.mxu0 %v355
    %421 = vmatprep.subr.bf16.mxu0 %v358
    %422 = vmatpush1.bf16.msra.mxu0 %v357
    %423 = vmatprep.subr.bf16.mxu0 %v360
    %424 = vmatpush1.bf16.msra.mxu0 %v359
    %425 = vmatprep.subr.bf16.mxu0 %v362
    %426 = vmatpush1.bf16.msra.mxu0 %v361
    %427 = vmatprep.subr.bf16.mxu0 %v364
    %428 = vmatpush1.bf16.msra.mxu0 %v363
    %429 = vmatprep.subr.bf16.mxu0 %v366
    %430 = vmatpush1.bf16.msra.mxu0 %v365
    %431 = vmatprep.subr.bf16.mxu0 %v368
    %432 = vmatpush1.bf16.msra.mxu0 %v367
    %433 = vmatprep.subr.bf16.mxu0 %v370
    %434 = vmatpush1.bf16.msra.mxu0 %v369
    %435 = vmatprep.subr.bf16.mxu0 %v372
    %436 = vmatpush1.bf16.msra.mxu0 %v371
    %437 = vmatprep.subr.bf16.mxu0 %v374
    %438 = vmatpush1.bf16.msra.mxu0 %v373
    %439 = vmatprep.subr.bf16.mxu0 %v376
    %440 = vmatpush1.bf16.msra.mxu0 %v375
    %441 = vmatprep.mubr.bf16.mxu0 %v204
    %442 = vmatmul.mubr.bf16.gmra.mrb[0].mxu0 %v203
    %v443 = vpop.f32.mrb[0].mxu0
    %v444 = vadd.f32 %v242, %v443
    %v445 = vpop.f32.mrb[0].mxu0
    %v446 = vadd.f32 %v246, %v445
    %v447 = vpop.f32.mrb[0].mxu0
    %v448 = vadd.f32 %v242, %v447
    %v449 = vpop.f32.mrb[0].mxu0
    %v450 = vadd.f32 %v246, %v449
    %451 = vdwg.mxu0
    %v452 = vmax.f32 %v444, 0.0
    %v453 = vmax.f32 %v446, 0.0
    %v454 = vmax.f32 %v448, 0.0
    %v455 = vmax.f32 %v450, 0.0
    %v456 = vpack.c.bf16 %v454, %v452
    %v457 = vpack.c.bf16 %v455, %v453
    %v458 = vld [vmem:[%s7] sm:$0xf]
    %v459 = vld [vmem:[%s7 + $0x4] sm:$0xf]
    %v460 = vld [vmem:[%s7 + $0x8] sm:$0xf]
    %v461 = vld [vmem:[%s7 + $0xc] sm:$0xf]
    %v462 = vld [vmem:[%s7 + $0x10] sm:$0xf]
    %v463 = vld [vmem:[%s7 + $0x14] sm:$0xf]
    %v464 = vld [vmem:[%s7 + $0x18] sm:$0xf]
    %v465 = vld [vmem:[%s7 + $0x1c] sm:$0xf]
    %v466 = vld [vmem:[%s7 + $0x20] sm:$0xf]
    %v467 = vld [vmem:[%s7 + $0x24] sm:$0xf]
    %v468 = vld [vmem:[%s7 + $0x28] sm:$0xf]
    %v469 = vld [vmem:[%s7 + $0x2c] sm:$0xf]
    %v470 = vld [vmem:[%s7 + $0x30] sm:$0xf]
    %v471 = vld [vmem:[%s7 + $0x34] sm:$0xf]
    %v472 = vld [vmem:[%s7 + $0x38] sm:$0xf]
    %v473 = vld [vmem:[%s7 + $0x3c] sm:$0xf]
    %v474 = vld [vmem:[%s7 + $0x40] sm:$0xf]
    %v475 = vld [vmem:[%s7 + $0x44] sm:$0xf]
    %v476 = vld [vmem:[%s7 + $0x48] sm:$0xf]
    %v477 = vld [vmem:[%s7 + $0x4c] sm:$0xf]
    %v478 = vld [vmem:[%s7 + $0x50] sm:$0xf]
    %v479 = vld [vmem:[%s7 + $0x54] sm:$0xf]
    %v480 = vld [vmem:[%s7 + $0x58] sm:$0xf]
    %v481 = vld [vmem:[%s7 + $0x5c] sm:$0xf]
    %v482 = vld [vmem:[%s7 + $0x60] sm:$0xf]
    %v483 = vld [vmem:[%s7 + $0x64] sm:$0xf]
    %v484 = vld [vmem:[%s7 + $0x68] sm:$0xf]
    %v485 = vld [vmem:[%s7 + $0x6c] sm:$0xf]
    %v486 = vld [vmem:[%s7 + $0x70] sm:$0xf]
    %v487 = vld [vmem:[%s7 + $0x74] sm:$0xf]
    %v488 = vld [vmem:[%s7 + $0x78] sm:$0xf]
    %v489 = vld [vmem:[%s7 + $0x7c] sm:$0xf]
    %v490 = vld [vmem:[#allocation2] sm:$0x1]
    %v492 = vlaneseq
    %v493 = vshrl.u32 %v492, 7
    %v494 = vsub.s32 0, %v493
    %v495 = vrot.slane %v490, %v494
    %v529 = vunpack.c.l.b16 %v458
    %v530 = vunpack.c.l.b16 %v459
    %v531 = vunpack.c.l.b16 %v460
    %v532 = vunpack.c.l.b16 %v461
    %v533 = vunpack.c.l.b16 %v462
    %v534 = vunpack.c.l.b16 %v463
    %v535 = vunpack.c.l.b16 %v464
    %v536 = vunpack.c.l.b16 %v465
    %v537 = vunpack.c.l.b16 %v466
    %v538 = vunpack.c.l.b16 %v467
    %v539 = vunpack.c.l.b16 %v468
    %v540 = vunpack.c.l.b16 %v469
    %v541 = vunpack.c.l.b16 %v470
    %v542 = vunpack.c.l.b16 %v471
    %v543 = vunpack.c.l.b16 %v472
    %v544 = vunpack.c.l.b16 %v473
    %v545 = vunpack.c.l.b16 %v474
    %v546 = vunpack.c.l.b16 %v475
    %v547 = vunpack.c.l.b16 %v476
    %v548 = vunpack.c.l.b16 %v477
    %v549 = vunpack.c.l.b16 %v478
    %v550 = vunpack.c.l.b16 %v479
    %v551 = vunpack.c.l.b16 %v480
    %v552 = vunpack.c.l.b16 %v481
    %v553 = vunpack.c.l.b16 %v482
    %v554 = vunpack.c.l.b16 %v483
    %v555 = vunpack.c.l.b16 %v484
    %v556 = vunpack.c.l.b16 %v485
    %v557 = vunpack.c.l.b16 %v486
    %v558 = vunpack.c.l.b16 %v487
    %v559 = vunpack.c.l.b16 %v488
    %v560 = vunpack.c.l.b16 %v489
    %v561 = vpack.c.b16 %v530, %v529
    %v562 = vpack.c.b16 %v532, %v531
    %v563 = vpack.c.b16 %v534, %v533
    %v564 = vpack.c.b16 %v536, %v535
    %v565 = vpack.c.b16 %v538, %v537
    %v566 = vpack.c.b16 %v540, %v539
    %v567 = vpack.c.b16 %v542, %v541
    %v568 = vpack.c.b16 %v544, %v543
    %v569 = vpack.c.b16 %v546, %v545
    %v570 = vpack.c.b16 %v548, %v547
    %v571 = vpack.c.b16 %v550, %v549
    %v572 = vpack.c.b16 %v552, %v551
    %v573 = vpack.c.b16 %v554, %v553
    %v574 = vpack.c.b16 %v556, %v555
    %v575 = vpack.c.b16 %v558, %v557
    %v576 = vpack.c.b16 %v560, %v559
    %593 = vmatprep.subr.bf16.mxu0 0
    %594 = vmatpush1.bf16.msra.mxu0 %v561
    %595 = vmatprep.subr.bf16.mxu0 0
    %596 = vmatpush1.bf16.msra.mxu0 %v562
    %597 = vmatprep.subr.bf16.mxu0 0
    %598 = vmatpush1.bf16.msra.mxu0 %v563
    %599 = vmatprep.subr.bf16.mxu0 0
    %600 = vmatpush1.bf16.msra.mxu0 %v564
    %601 = vmatprep.subr.bf16.mxu0 0
    %602 = vmatpush1.bf16.msra.mxu0 %v565
    %603 = vmatprep.subr.bf16.mxu0 0
    %604 = vmatpush1.bf16.msra.mxu0 %v566
    %605 = vmatprep.subr.bf16.mxu0 0
    %606 = vmatpush1.bf16.msra.mxu0 %v567
    %607 = vmatprep.subr.bf16.mxu0 0
    %608 = vmatpush1.bf16.msra.mxu0 %v568
    %609 = vmatprep.subr.bf16.mxu0 0
    %610 = vmatpush1.bf16.msra.mxu0 %v569
    %611 = vmatprep.subr.bf16.mxu0 0
    %612 = vmatpush1.bf16.msra.mxu0 %v570
    %613 = vmatprep.subr.bf16.mxu0 0
    %614 = vmatpush1.bf16.msra.mxu0 %v571
    %615 = vmatprep.subr.bf16.mxu0 0
    %616 = vmatpush1.bf16.msra.mxu0 %v572
    %617 = vmatprep.subr.bf16.mxu0 0
    %618 = vmatpush1.bf16.msra.mxu0 %v573
    %619 = vmatprep.subr.bf16.mxu0 0
    %620 = vmatpush1.bf16.msra.mxu0 %v574
    %621 = vmatprep.subr.bf16.mxu0 0
    %622 = vmatpush1.bf16.msra.mxu0 %v575
    %623 = vmatprep.subr.bf16.mxu0 0
    %624 = vmatpush1.bf16.msra.mxu0 %v576
    %625 = vmatprep.mubr.bf16.mxu0 %v457
    %626 = vmatmul.mubr.bf16.gmra.mrb[0].mxu0 %v456
    %v627 = vpop.f32.mrb[0].mxu0
    %v628 = vadd.f32 %v495, %v627
    %v629 = vpop.f32.mrb[0].mxu0
    %v630 = vpop.f32.mrb[0].mxu0
    %v631 = vadd.f32 %v495, %v630
    %v632 = vpop.f32.mrb[0].mxu0
    %633 = vdwg.mxu0
    %vm634 = vcmask 7168
    %635 = vst.msk [vmem:[%s9] sm:$0xff] %vm634, %v628
    %636 = vst.msk [vmem:[%s9 + $0x8] sm:$0xff] %vm634, %v631
    // Predicated region
    $region42: #{tpu_custom_call.1} parent=1 // pred_check
      _
    $region43: #{tpu_custom_call.1} parent=1 // pred_check_branch
      %638 = sbr.rel (0) target = $region45
    $region44: #{tpu_custom_call.1} parent=1 // pred_region
      _
    $region45: #{tpu_custom_call.1} parent=1 // pred_fallthru
      _
    // Predicated region
    $region46: #{tpu_custom_call.1} parent=1 // pred_check
      _
    $region47: #{tpu_custom_call.1} parent=1 // pred_check_branch
      %640 = sbr.rel (0) target = $region49
    $region48: #{tpu_custom_call.1} parent=1 // pred_region
      _
    $region49: #{tpu_custom_call.1} parent=1 // pred_fallthru
      _
    %641 = vsyncpa [#allocation4], 1

</llo_original>
